<compile_context>
chip_gen: v7x
topology: tpu7x:2x2x1
jax: 0.10.0
libtpu: 0.0.40
codegen_flags: <defaults>
</compile_context>

<pallas_src>
import functools

import jax
import jax.numpy as jnp
from jax import lax
from jax.experimental import pallas as pl
from jax.experimental.pallas import tpu as pltpu


def _round_up(v, m):
    return (v + m - 1) // m * m


def _tpu_kind():
    try:
        dev = jax.devices()[0]
        if dev.platform == "tpu":
            return dev.device_kind.lower()
    except Exception:
        pass
    return ""


def _gcn_kernel(*refs, loop_val, add_loop, has_mask, fused):
    # Fused   ref layout: adj, x, w, dinv_col, dinv_row, bias, [mask], out, acc
    # Unfused ref layout: adj, z,            dinv_row, bias, [mask], out, acc
    if fused:
        adj_ref, x_ref, w_ref, dinv_c_ref, dinv_r_ref, bias_ref = refs[:6]
        rest = refs[6:]
    else:
        adj_ref, z_ref, dinv_r_ref, bias_ref = refs[:4]
        rest = refs[4:]
    if has_mask:
        mask_ref = rest[0]
        rest = rest[1:]
    else:
        mask_ref = None
    o_ref, acc_ref = rest

    r = pl.program_id(1)
    k = pl.program_id(2)
    tb, tn, tk = adj_ref.shape
    cdt = adj_ref.dtype

    @pl.when(k == 0)
    def _init():
        acc_ref[...] = jnp.zeros_like(acc_ref)

    # dinv-scaled, transformed features of the current column (k) tile.
    if fused:
        # Recomputed on the fly per row tile (cheap when F_in << TN); removes the
        # (B, N, Fp) z array HBM round trip entirely.
        z = [
            (dinv_c_ref[b]
             * jnp.dot(x_ref[b], w_ref[...], preferred_element_type=jnp.float32)
             ).astype(cdt)
            for b in range(tb)
        ]
    else:
        z = [z_ref[b] for b in range(tb)]

    def _accumulate(replace_diag):
        if replace_diag:
            row = lax.broadcasted_iota(jnp.int32, (tn, tk), 0)
            col = lax.broadcasted_iota(jnp.int32, (tn, tk), 1)
            eye = row == col
        for b in range(tb):
            a_b = adj_ref[b]
            if replace_diag:
                a_b = jnp.where(eye, jnp.asarray(loop_val, dtype=cdt), a_b)
            acc_ref[b] += jnp.dot(a_b, z[b], preferred_element_type=jnp.float32)

    if add_loop:
        # Only the diagonal block (k == r, TN == TK) contains self-loop entries.
        @pl.when(k == r)
        def _diag():
            _accumulate(True)

        @pl.when(k != r)
        def _offdiag():
            _accumulate(False)
    else:
        _accumulate(False)

    @pl.when(k == pl.num_programs(2) - 1)
    def _finalize():
        out = dinv_r_ref[...] * acc_ref[...] + bias_ref[...]
        if mask_ref is not None:
            out = out * mask_ref[...]
        o_ref[...] = out.astype(o_ref.dtype)   # single lane-dense store per tile


def dense_gcn_conv(x, adj, weight, bias=None, *, improved=False, add_loop=True,
                   mask=None, dinv=None, compute_dtype=jnp.bfloat16,
                   fuse_transform=None, row_tile=None, batch_tile=None):
    """Forward pass matching torch_geometric's DenseGCNConv.

    dinv           : optional pre-computed deg^-1/2, shape (B, N) or (B, N, 1).
                     Multi-layer GNNs reusing the same adjacency should pass this in
                     so the degree reduce over adj happens only once.
    compute_dtype  : MXU operand dtype for adjacency / features (bf16 default; exact
                     for 0/1/loop_val adjacencies).  Accumulation is always f32.
    fuse_transform : recompute dinv*(x@W) inside the k-loop (auto: when F_in is small).
    """
    if x.ndim == 2:
        x = x[None]
    if adj.ndim == 2:
        adj = adj[None]
    B, N, F_in = x.shape
    assert adj.shape == (B, N, N)
    assert weight.shape[0] == F_in
    F_out = weight.shape[1]
    loop_val = 2.0 if improved else 1.0
    out_dtype = x.dtype
    cdt = jnp.dtype(compute_dtype)

    # ---- degree normalisation: slim XLA row-reduce, or caller-provided ------------
    if dinv is None:
        adj_f32 = adj.astype(jnp.float32)
        deg = jnp.sum(adj_f32, axis=-1)
        if add_loop:
            deg = deg - jnp.diagonal(adj_f32, axis1=-2, axis2=-1) + loop_val
        dinv = lax.rsqrt(jnp.maximum(deg, 1.0))
    dinv = dinv.reshape(B, N).astype(jnp.float32)

    # ---- generation-aware tiling ---------------------------------------------------
    kind = _tpu_kind()
    wide_mxu = ("v6" in kind) or ("v7" in kind)
    if row_tile is None:
        row_tile = 256 if wide_mxu else 128
    vmem_limit = (32 if "v7" in kind else 64) * 1024 * 1024

    Fp = _round_up(F_out, 128)               # lane-dense output slab
    n_pad8 = _round_up(N, 8)
    if n_pad8 <= row_tile:
        # Small graph: single (row, col) tile; batch several graphs per grid step.
        TN = n_pad8
        TB = batch_tile if batch_tile is not None else max(1, 256 // TN)
        TB = max(1, min(TB, B))
    else:
        TN = max(128, (row_tile // 128) * 128)   # TK is the adjacency block's lane dim
        TB = 1
    TK = TN
    Np = _round_up(N, TN)
    Bp = _round_up(B, TB)
    grid = (Bp // TB, Np // TN, Np // TK)

    if fuse_transform is None:
        fuse_transform = F_in <= max(64, TN // 2)

    # ---- wrapper-side padding / casting (fused by XLA into one pass over adj) ------
    def pad3(a, b_to, n_to, f_to, fill=0.0):
        return jnp.pad(a, ((0, b_to - a.shape[0]), (0, n_to - a.shape[1]),
                           (0, f_to - a.shape[2])), constant_values=fill)

    adj_p = pad3(adj.astype(cdt), Bp, Np, Np)
    dinv_p = pad3(dinv[..., None], Bp, Np, 1, fill=1.0)
    bias_p = jnp.zeros((1, 1, Fp), jnp.float32)
    if bias is not None:
        bias_p = bias_p.at[0, 0, :F_out].set(bias.astype(jnp.float32))

    if fuse_transform:
        x_p = pad3(x.astype(cdt), Bp, Np, F_in)
        w_p = jnp.zeros((F_in, Fp), cdt).at[:, :F_out].set(weight.astype(cdt))
        feat_args = (x_p, w_p, dinv_p)
        feat_specs = (
            pl.BlockSpec((TB, TK, F_in), lambda b, r, k: (b, k, 0)),
            pl.BlockSpec((F_in, Fp), lambda b, r, k: (0, 0)),
            pl.BlockSpec((TB, TK, 1), lambda b, r, k: (b, k, 0)),
        )
    else:
        # Wide F_in: precompute z = dinv * (x @ W) once with XLA instead of
        # recomputing it per row tile inside the kernel.
        y = jnp.einsum("bnf,fo->bno", x.astype(cdt), weight.astype(cdt),
                       preferred_element_type=jnp.float32)
        z = (dinv[..., None] * y).astype(cdt)
        z_p = pad3(z, Bp, Np, Fp)
        feat_args = (z_p,)
        feat_specs = (pl.BlockSpec((TB, TK, Fp), lambda b, r, k: (b, k, 0)),)

    args = (adj_p, *feat_args, dinv_p, bias_p)
    in_specs = [
        pl.BlockSpec((TB, TN, TK), lambda b, r, k: (b, r, k)),      # adjacency tile
        *feat_specs,
        pl.BlockSpec((TB, TN, 1), lambda b, r, k: (b, r, 0)),       # dinv (row side)
        pl.BlockSpec((1, 1, Fp), lambda b, r, k: (0, 0, 0)),        # bias
    ]
    if mask is not None:
        mask_p = pad3(mask.reshape(B, N, 1).astype(jnp.float32), Bp, Np, 1)
        args = args + (mask_p,)
        in_specs.append(pl.BlockSpec((TB, TN, 1), lambda b, r, k: (b, r, 0)))

    csize = cdt.itemsize
    cost = pl.CostEstimate(
        flops=2 * Bp * Np * Np * Fp
              + 2 * Bp * Np * F_in * Fp * (grid[1] if fuse_transform else 1),
        transcendentals=0,
        bytes_accessed=Bp * Np * Np * csize
                       + grid[1] * Bp * Np * (F_in if fuse_transform else Fp) * csize
                       + Bp * Np * Fp * jnp.dtype(out_dtype).itemsize,
    )

    out_p = pl.pallas_call(
        functools.partial(_gcn_kernel, loop_val=loop_val, add_loop=add_loop,
                          has_mask=mask is not None, fused=fuse_transform),
        out_shape=jax.ShapeDtypeStruct((Bp, Np, Fp), out_dtype),
        grid_spec=pltpu.PrefetchScalarGridSpec(
            num_scalar_prefetch=0,
            grid=grid,
            in_specs=in_specs,
            out_specs=pl.BlockSpec((TB, TN, Fp), lambda b, r, k: (b, r, 0)),
            scratch_shapes=[pltpu.VMEM((TB, TN, Fp), jnp.float32)],
        ),
        compiler_params=pltpu.CompilerParams(
            dimension_semantics=("parallel", "parallel", "arbitrary"),
            vmem_limit_bytes=vmem_limit,
        ),
        cost_estimate=cost,
    )(*args)

    return out_p[:B, :N, :F_out]


def _reference(x, adj, weight, bias=None, *, improved=False, add_loop=True, mask=None):
    # Pure-JAX mirror of the PyTorch forward, for correctness checks.
    if x.ndim == 2:
        x = x[None]
    if adj.ndim == 2:
        adj = adj[None]
    B, N, _ = adj.shape
    if add_loop:
        idx = jnp.arange(N)
        adj = adj.at[:, idx, idx].set(2.0 if improved else 1.0)
    out = jnp.einsum("bnf,fo->bno", x, weight)
    deg_inv_sqrt = jnp.maximum(adj.sum(-1), 1.0) ** -0.5
    adj = deg_inv_sqrt[:, :, None] * adj * deg_inv_sqrt[:, None, :]
    out = jnp.einsum("bnm,bmo->bno", adj, out)
    if bias is not None:
        out = out + bias
    if mask is not None:
        out = out * mask.reshape(B, N, 1).astype(x.dtype)
    return out


if __name__ == "__main__":
    key = jax.random.PRNGKey(0)
    k_x, k_adj, k_w, k_b, k_m, k_x2, k_adj2 = jax.random.split(key, 7)

    # ---- small graph (exercises the batched TB>1 single-tile path) ----------------
    B, N, F_in, F_out = 2, 16, 8, 32
    x = jax.random.normal(k_x, (B, N, F_in), dtype=jnp.float32)
    adj_raw = (jax.random.uniform(k_adj, (B, N, N)) > 0.7).astype(jnp.float32)
    adj = jnp.maximum(adj_raw, jnp.swapaxes(adj_raw, -1, -2))
    stdv = (6.0 / (F_in + F_out)) ** 0.5
    weight = jax.random.uniform(k_w, (F_in, F_out), minval=-stdv, maxval=stdv,
                                dtype=jnp.float32)
    bias = 0.1 * jax.random.normal(k_b, (F_out,), dtype=jnp.float32)
    mask = jax.random.uniform(k_m, (B, N)) > 0.3

    ref = _reference(x, adj, weight, bias)
    ref_m = _reference(x, adj, weight, bias, mask=mask)

    # Exact (f32) path, fused feature transform.
    out = jax.block_until_ready(
        dense_gcn_conv(x, adj, weight, bias, compute_dtype=jnp.float32))
    assert out.shape == (B, N, F_out)
    assert jnp.allclose(out, ref, atol=1e-4, rtol=1e-4)

    # Exact (f32) path, precomputed z (fuse_transform=False) + fused mask.
    out_nf = jax.block_until_ready(
        dense_gcn_conv(x, adj, weight, bias, mask=mask,
                       compute_dtype=jnp.float32, fuse_transform=False))
    assert jnp.allclose(out_nf, ref_m, atol=1e-4, rtol=1e-4)

    # Default bf16 fast path (exact 0/1 adjacency, ~bf16-accurate features).
    out_bf = jax.block_until_ready(dense_gcn_conv(x, adj, weight, bias, mask=mask))
    assert jnp.allclose(out_bf, ref_m, atol=3e-2, rtol=3e-2)

    # Caller-provided dinv (adjacency-reuse API for multi-layer GNNs).
    deg = jnp.maximum(adj.sum(-1) - jnp.diagonal(adj, axis1=-2, axis2=-1) + 1.0, 1.0)
    out_d = jax.block_until_ready(
        dense_gcn_conv(x, adj, weight, bias, dinv=deg ** -0.5,
                       compute_dtype=jnp.float32))
    assert jnp.allclose(out_d, ref, atol=1e-4, rtol=1e-4)

    # ---- larger graph (exercises k-tiled accumulation, diag pl.when, padding) -----
    B2, N2 = 2, 200
    x2 = jax.random.normal(k_x2, (B2, N2, F_in), dtype=jnp.float32)
    adj2_raw = (jax.random.uniform(k_adj2, (B2, N2, N2)) > 0.9).astype(jnp.float32)
    adj2 = jnp.maximum(adj2_raw, jnp.swapaxes(adj2_raw, -1, -2))
    ref2 = _reference(x2, adj2, weight, bias, improved=True)

    out2 = jax.block_until_ready(
        dense_gcn_conv(x2, adj2, weight, bias, improved=True,
                       compute_dtype=jnp.float32, row_tile=128))
    assert out2.shape == (B2, N2, F_out)
    assert jnp.allclose(out2, ref2, atol=1e-4, rtol=1e-4)

    out2_bf = jax.block_until_ready(
        dense_gcn_conv(x2, adj2, weight, bias, improved=True, row_tile=128))
    assert jnp.allclose(out2_bf, ref2, atol=3e-2, rtol=3e-2)

    print("KERNEL_OK")
</pallas_src>

<mosaic_0001>
module attributes {stable_mosaic.version = 11 : i64} {
  func.func @_gcn_kernel(%arg0: i32, %arg1: i32, %arg2: i32, %arg3: memref<2x16x16xf32, #tpu.memory_space<vmem>>, %arg4: memref<2x16x8xf32, #tpu.memory_space<vmem>>, %arg5: memref<8x128xf32, #tpu.memory_space<vmem>>, %arg6: memref<2x16x1xf32, #tpu.memory_space<vmem>>, %arg7: memref<2x16x1xf32, #tpu.memory_space<vmem>>, %arg8: memref<1x1x128xf32, #tpu.memory_space<vmem>>, %arg9: memref<2x16x128xf32, #tpu.memory_space<vmem>>, %arg10: memref<2x16x128xf32, #tpu.memory_space<vmem>>) attributes {dimension_semantics = [#tpu.dimension_semantics<parallel>, #tpu.dimension_semantics<parallel>, #tpu.dimension_semantics<arbitrary>], iteration_bounds = array<i64: 1, 1, 1>, scalar_prefetch = 0 : i64, scratch_operands = 1 : i64, tpu.core_type = #tpu.core_type<tc>, window_params = [{transform_indices = @transform_0, window_bounds = array<i64: 2, 16, 16>}, {transform_indices = @transform_1, window_bounds = array<i64: 2, 16, 8>}, {pipeline_mode = #tpu.pipeline_mode<synchronous>, transform_indices = @transform_2, window_bounds = array<i64: 8, 128>}, {transform_indices = @transform_3, window_bounds = array<i64: 2, 16, 1>}, {transform_indices = @transform_4, window_bounds = array<i64: 2, 16, 1>}, {pipeline_mode = #tpu.pipeline_mode<synchronous>, transform_indices = @transform_5, window_bounds = array<i64: 1, 1, 128>}, {transform_indices = @transform_6, window_bounds = array<i64: 2, 16, 128>}]} {
    %c0_i32 = arith.constant 0 : i32
    %0 = arith.cmpi eq, %arg2, %c0_i32 : i32
    %1 = arith.extui %0 : i1 to i32
    %c0_i32_0 = arith.constant 0 : i32
    %2 = arith.cmpi ne, %1, %c0_i32_0 : i32
    scf.if %2 {
      %cst_20 = arith.constant 0.000000e+00 : f32
      %28 = vector.broadcast %cst_20 : f32 to vector<2x16x128xf32>
      %c0_21 = arith.constant 0 : index
      %c0_22 = arith.constant 0 : index
      %c0_23 = arith.constant 0 : index
      %29 = vector.load %arg10[%c0_21, %c0_22, %c0_23] : memref<2x16x128xf32, #tpu.memory_space<vmem>>, vector<2x16x128xf32>
      tpu.vector_store %arg10[%c0_21, %c0_22, %c0_23], %28 {strides = array<i32>} : memref<2x16x128xf32, #tpu.memory_space<vmem>>, vector<2x16x128xf32>,
    } else {
    }
    %c0 = arith.constant 0 : index
    %c0_1 = arith.constant 0 : index
    %c0_2 = arith.constant 0 : index
    %3 = vector.load %arg6[%c0, %c0_1, %c0_2] : memref<2x16x1xf32, #tpu.memory_space<vmem>>, vector<1x16x1xf32>
    %4 = vector.shape_cast %3 : vector<1x16x1xf32> to vector<16x1xf32>
    %c0_3 = arith.constant 0 : index
    %c0_4 = arith.constant 0 : index
    %c0_5 = arith.constant 0 : index
    %5 = vector.load %arg4[%c0_3, %c0_4, %c0_5] : memref<2x16x8xf32, #tpu.memory_space<vmem>>, vector<1x16x8xf32>
    %6 = vector.shape_cast %5 : vector<1x16x8xf32> to vector<16x8xf32>
    %c0_6 = arith.constant 0 : index
    %c0_7 = arith.constant 0 : index
    %7 = vector.load %arg5[%c0_6, %c0_7] : memref<8x128xf32, #tpu.memory_space<vmem>>, vector<8x128xf32>
    %cst = arith.constant dense<0.000000e+00> : vector<16x128xf32>
    %8 = tpu.matmul %6, %7, %cst {dimension_numbers = #tpu.dot_dimension_numbers<[1], [0], [0], [1], [0, 0, 1, 1], [], []>} : vector<16x8xf32>, vector<8x128xf32>, vector<16x128xf32> -> vector<16x128xf32>
    %9 = vector.broadcast %4 : vector<16x1xf32> to vector<16x128xf32>
    %10 = arith.mulf %9, %8 : vector<16x128xf32>
    %c1 = arith.constant 1 : index
    %c0_8 = arith.constant 0 : index
    %c0_9 = arith.constant 0 : index
    %11 = vector.load %arg6[%c1, %c0_8, %c0_9] : memref<2x16x1xf32, #tpu.memory_space<vmem>>, vector<1x16x1xf32>
    %12 = vector.shape_cast %11 : vector<1x16x1xf32> to vector<16x1xf32>
    %c1_10 = arith.constant 1 : index
    %c0_11 = arith.constant 0 : index
    %c0_12 = arith.constant 0 : index
    %13 = vector.load %arg4[%c1_10, %c0_11, %c0_12] : memref<2x16x8xf32, #tpu.memory_space<vmem>>, vector<1x16x8xf32>
    %14 = vector.shape_cast %13 : vector<1x16x8xf32> to vector<16x8xf32>
    %c0_13 = arith.constant 0 : index
    %c0_14 = arith.constant 0 : index
    %15 = vector.load %arg5[%c0_13, %c0_14] : memref<8x128xf32, #tpu.memory_space<vmem>>, vector<8x128xf32>
    %cst_15 = arith.constant dense<0.000000e+00> : vector<16x128xf32>
    %16 = tpu.matmul %14, %15, %cst_15 {dimension_numbers = #tpu.dot_dimension_numbers<[1], [0], [0], [1], [0, 0, 1, 1], [], []>} : vector<16x8xf32>, vector<8x128xf32>, vector<16x128xf32> -> vector<16x128xf32>
    %17 = vector.broadcast %12 : vector<16x1xf32> to vector<16x128xf32>
    %18 = arith.mulf %17, %16 : vector<16x128xf32>
    %19 = arith.cmpi eq, %arg2, %arg1 : i32
    %20 = arith.extui %19 : i1 to i32
    %c0_i32_16 = arith.constant 0 : i32
    %21 = arith.cmpi ne, %20, %c0_i32_16 : i32
    scf.if %21 {
      %28 = tpu.iota {dimensions = array<i32: 0>} : vector<16x16xi32>
      %29 = tpu.iota {dimensions = array<i32: 1>} : vector<16x16xi32>
      %30 = arith.cmpi eq, %28, %29 : vector<16x16xi32>
      %c0_20 = arith.constant 0 : index
      %c0_21 = arith.constant 0 : index
      %c0_22 = arith.constant 0 : index
      %31 = vector.load %arg3[%c0_20, %c0_21, %c0_22] : memref<2x16x16xf32, #tpu.memory_space<vmem>>, vector<1x16x16xf32>
      %32 = vector.shape_cast %31 : vector<1x16x16xf32> to vector<16x16xf32>
      %cst_23 = arith.constant 1.000000e+00 : f32
      %33 = vector.broadcast %cst_23 : f32 to vector<16x16xf32>
      %34 = arith.select %30, %33, %32 : vector<16x16xi1>, vector<16x16xf32>
      %c0_24 = arith.constant 0 : index
      %c0_25 = arith.constant 0 : index
      %c0_26 = arith.constant 0 : index
      %35 = vector.load %arg10[%c0_24, %c0_25, %c0_26] : memref<2x16x128xf32, #tpu.memory_space<vmem>>, vector<1x16x128xf32>
      %36 = vector.shape_cast %35 : vector<1x16x128xf32> to vector<16x128xf32>
      %cst_27 = arith.constant dense<0.000000e+00> : vector<16x128xf32>
      %37 = tpu.matmul %34, %10, %cst_27 {dimension_numbers = #tpu.dot_dimension_numbers<[1], [0], [0], [1], [0, 0, 1, 1], [], []>} : vector<16x16xf32>, vector<16x128xf32>, vector<16x128xf32> -> vector<16x128xf32>
      %38 = arith.addf %36, %37 : vector<16x128xf32>
      %c0_28 = arith.constant 0 : index
      %c0_29 = arith.constant 0 : index
      %c0_30 = arith.constant 0 : index
      %39 = vector.load %arg10[%c0_28, %c0_29, %c0_30] : memref<2x16x128xf32, #tpu.memory_space<vmem>>, vector<1x16x128xf32>
      %40 = vector.shape_cast %39 : vector<1x16x128xf32> to vector<16x128xf32>
      %41 = vector.shape_cast %38 : vector<16x128xf32> to vector<1x16x128xf32>
      tpu.vector_store %arg10[%c0_28, %c0_29, %c0_30], %41 {strides = array<i32>} : memref<2x16x128xf32, #tpu.memory_space<vmem>>, vector<1x16x128xf32>,
      %c1_31 = arith.constant 1 : index
      %c0_32 = arith.constant 0 : index
      %c0_33 = arith.constant 0 : index
      %42 = vector.load %arg3[%c1_31, %c0_32, %c0_33] : memref<2x16x16xf32, #tpu.memory_space<vmem>>, vector<1x16x16xf32>
      %43 = vector.shape_cast %42 : vector<1x16x16xf32> to vector<16x16xf32>
      %cst_34 = arith.constant 1.000000e+00 : f32
      %44 = vector.broadcast %cst_34 : f32 to vector<16x16xf32>
      %45 = arith.select %30, %44, %43 : vector<16x16xi1>, vector<16x16xf32>
      %c1_35 = arith.constant 1 : index
      %c0_36 = arith.constant 0 : index
      %c0_37 = arith.constant 0 : index
      %46 = vector.load %arg10[%c1_35, %c0_36, %c0_37] : memref<2x16x128xf32, #tpu.memory_space<vmem>>, vector<1x16x128xf32>
      %47 = vector.shape_cast %46 : vector<1x16x128xf32> to vector<16x128xf32>
      %cst_38 = arith.constant dense<0.000000e+00> : vector<16x128xf32>
      %48 = tpu.matmul %45, %18, %cst_38 {dimension_numbers = #tpu.dot_dimension_numbers<[1], [0], [0], [1], [0, 0, 1, 1], [], []>} : vector<16x16xf32>, vector<16x128xf32>, vector<16x128xf32> -> vector<16x128xf32>
      %49 = arith.addf %47, %48 : vector<16x128xf32>
      %c1_39 = arith.constant 1 : index
      %c0_40 = arith.constant 0 : index
      %c0_41 = arith.constant 0 : index
      %50 = vector.load %arg10[%c1_39, %c0_40, %c0_41] : memref<2x16x128xf32, #tpu.memory_space<vmem>>, vector<1x16x128xf32>
      %51 = vector.shape_cast %50 : vector<1x16x128xf32> to vector<16x128xf32>
      %52 = vector.shape_cast %49 : vector<16x128xf32> to vector<1x16x128xf32>
      tpu.vector_store %arg10[%c1_39, %c0_40, %c0_41], %52 {strides = array<i32>} : memref<2x16x128xf32, #tpu.memory_space<vmem>>, vector<1x16x128xf32>,
    } else {
    }
    %22 = arith.cmpi ne, %arg2, %arg1 : i32
    %23 = arith.extui %22 : i1 to i32
    %c0_i32_17 = arith.constant 0 : i32
    %24 = arith.cmpi ne, %23, %c0_i32_17 : i32
    scf.if %24 {
      %c0_20 = arith.constant 0 : index
      %c0_21 = arith.constant 0 : index
      %c0_22 = arith.constant 0 : index
      %28 = vector.load %arg3[%c0_20, %c0_21, %c0_22] : memref<2x16x16xf32, #tpu.memory_space<vmem>>, vector<1x16x16xf32>
      %29 = vector.shape_cast %28 : vector<1x16x16xf32> to vector<16x16xf32>
      %c0_23 = arith.constant 0 : index
      %c0_24 = arith.constant 0 : index
      %c0_25 = arith.constant 0 : index
      %30 = vector.load %arg10[%c0_23, %c0_24, %c0_25] : memref<2x16x128xf32, #tpu.memory_space<vmem>>, vector<1x16x128xf32>
      %31 = vector.shape_cast %30 : vector<1x16x128xf32> to vector<16x128xf32>
      %cst_26 = arith.constant dense<0.000000e+00> : vector<16x128xf32>
      %32 = tpu.matmul %29, %10, %cst_26 {dimension_numbers = #tpu.dot_dimension_numbers<[1], [0], [0], [1], [0, 0, 1, 1], [], []>} : vector<16x16xf32>, vector<16x128xf32>, vector<16x128xf32> -> vector<16x128xf32>
      %33 = arith.addf %31, %32 : vector<16x128xf32>
      %c0_27 = arith.constant 0 : index
      %c0_28 = arith.constant 0 : index
      %c0_29 = arith.constant 0 : index
      %34 = vector.load %arg10[%c0_27, %c0_28, %c0_29] : memref<2x16x128xf32, #tpu.memory_space<vmem>>, vector<1x16x128xf32>
      %35 = vector.shape_cast %34 : vector<1x16x128xf32> to vector<16x128xf32>
      %36 = vector.shape_cast %33 : vector<16x128xf32> to vector<1x16x128xf32>
      tpu.vector_store %arg10[%c0_27, %c0_28, %c0_29], %36 {strides = array<i32>} : memref<2x16x128xf32, #tpu.memory_space<vmem>>, vector<1x16x128xf32>,
      %c1_30 = arith.constant 1 : index
      %c0_31 = arith.constant 0 : index
      %c0_32 = arith.constant 0 : index
      %37 = vector.load %arg3[%c1_30, %c0_31, %c0_32] : memref<2x16x16xf32, #tpu.memory_space<vmem>>, vector<1x16x16xf32>
      %38 = vector.shape_cast %37 : vector<1x16x16xf32> to vector<16x16xf32>
      %c1_33 = arith.constant 1 : index
      %c0_34 = arith.constant 0 : index
      %c0_35 = arith.constant 0 : index
      %39 = vector.load %arg10[%c1_33, %c0_34, %c0_35] : memref<2x16x128xf32, #tpu.memory_space<vmem>>, vector<1x16x128xf32>
      %40 = vector.shape_cast %39 : vector<1x16x128xf32> to vector<16x128xf32>
      %cst_36 = arith.constant dense<0.000000e+00> : vector<16x128xf32>
      %41 = tpu.matmul %38, %18, %cst_36 {dimension_numbers = #tpu.dot_dimension_numbers<[1], [0], [0], [1], [0, 0, 1, 1], [], []>} : vector<16x16xf32>, vector<16x128xf32>, vector<16x128xf32> -> vector<16x128xf32>
      %42 = arith.addf %40, %41 : vector<16x128xf32>
      %c1_37 = arith.constant 1 : index
      %c0_38 = arith.constant 0 : index
      %c0_39 = arith.constant 0 : index
      %43 = vector.load %arg10[%c1_37, %c0_38, %c0_39] : memref<2x16x128xf32, #tpu.memory_space<vmem>>, vector<1x16x128xf32>
      %44 = vector.shape_cast %43 : vector<1x16x128xf32> to vector<16x128xf32>
      %45 = vector.shape_cast %42 : vector<16x128xf32> to vector<1x16x128xf32>
      tpu.vector_store %arg10[%c1_37, %c0_38, %c0_39], %45 {strides = array<i32>} : memref<2x16x128xf32, #tpu.memory_space<vmem>>, vector<1x16x128xf32>,
    } else {
    }
    %c0_i32_18 = arith.constant 0 : i32
    %25 = arith.cmpi eq, %arg2, %c0_i32_18 : i32
    %26 = arith.extui %25 : i1 to i32
    %c0_i32_19 = arith.constant 0 : i32
    %27 = arith.cmpi ne, %26, %c0_i32_19 : i32
    scf.if %27 {
      %c0_20 = arith.constant 0 : index
      %c0_21 = arith.constant 0 : index
      %c0_22 = arith.constant 0 : index
      %28 = vector.load %arg7[%c0_20, %c0_21, %c0_22] : memref<2x16x1xf32, #tpu.memory_space<vmem>>, vector<2x16x1xf32>
      %c0_23 = arith.constant 0 : index
      %c0_24 = arith.constant 0 : index
      %c0_25 = arith.constant 0 : index
      %29 = vector.load %arg10[%c0_23, %c0_24, %c0_25] : memref<2x16x128xf32, #tpu.memory_space<vmem>>, vector<2x16x128xf32>
      %30 = vector.broadcast %28 : vector<2x16x1xf32> to vector<2x16x128xf32>
      %31 = arith.mulf %30, %29 : vector<2x16x128xf32>
      %c0_26 = arith.constant 0 : index
      %c0_27 = arith.constant 0 : index
      %c0_28 = arith.constant 0 : index
      %32 = vector.load %arg8[%c0_26, %c0_27, %c0_28] : memref<1x1x128xf32, #tpu.memory_space<vmem>>, vector<1x1x128xf32>
      %33 = vector.broadcast %32 : vector<1x1x128xf32> to vector<2x16x128xf32>
      %34 = arith.addf %31, %33 : vector<2x16x128xf32>
      %c0_29 = arith.constant 0 : index
      %c0_30 = arith.constant 0 : index
      %c0_31 = arith.constant 0 : index
      %35 = vector.load %arg9[%c0_29, %c0_30, %c0_31] : memref<2x16x128xf32, #tpu.memory_space<vmem>>, vector<2x16x128xf32>
      tpu.vector_store %arg9[%c0_29, %c0_30, %c0_31], %34 {strides = array<i32>} : memref<2x16x128xf32, #tpu.memory_space<vmem>>, vector<2x16x128xf32>,
    } else {
    }
    return
  }
  func.func @transform_0(%arg0: i32, %arg1: i32, %arg2: i32) -> (i32, i32, i32) {
    %c0_i32 = arith.constant 0 : i32
    return %arg0, %arg1, %arg2 : i32, i32, i32
  }
  func.func @transform_1(%arg0: i32, %arg1: i32, %arg2: i32) -> (i32, i32, i32) {
    %c0_i32 = arith.constant 0 : i32
    %c0_i32_0 = arith.constant 0 : i32
    return %arg0, %arg2, %c0_i32 : i32, i32, i32
  }
  func.func @transform_2(%arg0: i32, %arg1: i32, %arg2: i32) -> (i32, i32) {
    %c0_i32 = arith.constant 0 : i32
    %c0_i32_0 = arith.constant 0 : i32
    %c0_i32_1 = arith.constant 0 : i32
    return %c0_i32, %c0_i32_0 : i32, i32
  }
  func.func @transform_3(%arg0: i32, %arg1: i32, %arg2: i32) -> (i32, i32, i32) {
    %c0_i32 = arith.constant 0 : i32
    %c0_i32_0 = arith.constant 0 : i32
    return %arg0, %arg2, %c0_i32 : i32, i32, i32
  }
  func.func @transform_4(%arg0: i32, %arg1: i32, %arg2: i32) -> (i32, i32, i32) {
    %c0_i32 = arith.constant 0 : i32
    %c0_i32_0 = arith.constant 0 : i32
    return %arg0, %arg1, %c0_i32 : i32, i32, i32
  }
  func.func @transform_5(%arg0: i32, %arg1: i32, %arg2: i32) -> (i32, i32, i32) {
    %c0_i32 = arith.constant 0 : i32
    %c0_i32_0 = arith.constant 0 : i32
    %c0_i32_1 = arith.constant 0 : i32
    %c0_i32_2 = arith.constant 0 : i32
    return %c0_i32, %c0_i32_0, %c0_i32_1 : i32, i32, i32
  }
  func.func @transform_6(%arg0: i32, %arg1: i32, %arg2: i32) -> (i32, i32, i32) {
    %c0_i32 = arith.constant 0 : i32
    %c0_i32_0 = arith.constant 0 : i32
    return %arg0, %arg1, %c0_i32 : i32, i32, i32
  }
}

</mosaic_0001>

<llo_original>
// kernel: tpu_custom_call.1
$region0: #{tpu_custom_call.1}
  #allocation0 [shape = 'u32[]', space=smem, size = 0x4, offset = 0x4, fixed_abs, tag = 'smem constant byte address 0x4 - core index']
  #allocation1 [shape = 'u32[144,128]{1,0:T(1,128)}', space=vmem, size = 0x12000, scoped, tag = 'internal scratch']
  #allocation2 [shape = 'f32[2,16,128]{2,1,0:T(8,128)}', space=vmem, size = 0x4000, scoped, tag = 'scratch operand']
  %s0 = inlined_call_operand.hbm [shape: f32[2,16,16], index: 0, kind: input, shape index: {}]
  %s1 = inlined_call_operand.hbm [shape: f32[2,16,8], index: 1, kind: input, shape index: {}]
  %s2 = inlined_call_operand.hbm [shape: f32[8,128], index: 2, kind: input, shape index: {}]
  %s3 = inlined_call_operand.hbm [shape: f32[2,16,1], index: 3, kind: input, shape index: {}]
  %s4 = inlined_call_operand.hbm [shape: f32[2,16,1], index: 4, kind: input, shape index: {}]
  %s5 = inlined_call_operand.hbm [shape: f32[1,1,128], index: 5, kind: input, shape index: {}]
  %s6 = inlined_call_operand.hbm [shape: f32[2,16,128], index: 6, kind: output, shape index: {}]
  %s7 = sld [smem:[#allocation0]]
  $region74: #{tpu_custom_call.1} parent=0
    _
  %s9 = ssub.s32 1, %s7
  %s10 = scalar_select 0, %s9, %s7
  $region1: #{tpu_custom_call.1} parent=0
    #allocation3 [shape = 'u8[16384]{0}', space=vmem, size = 0x4000, scoped, tag = 'input window, operand 0, single buffered']
    #allocation4 [shape = 's32[1]{0}', space=sflag, size = 0x4, scoped, tag = 'scoped memory for tpu_custom_call.1']
    #allocation5 [shape = 's32[1]{0}', space=sflag, size = 0x4, scoped, tag = 'scoped memory for tpu_custom_call.1']
    #allocation6 [shape = 'u8[16384]{0}', space=vmem, size = 0x4000, scoped, tag = 'input window, operand 1, single buffered']
    #allocation7 [shape = 's32[1]{0}', space=sflag, size = 0x4, scoped, tag = 'scoped memory for tpu_custom_call.1']
    #allocation8 [shape = 'u8[4096]{0}', space=vmem, size = 0x1000, scoped, tag = 'input window, operand 2, single buffered']
    #allocation9 [shape = 'u8[16384]{0}', space=vmem, size = 0x4000, scoped, tag = 'input window, operand 3, single buffered']
    #allocation10 [shape = 's32[1]{0}', space=sflag, size = 0x4, scoped, tag = 'scoped memory for tpu_custom_call.1']
    #allocation11 [shape = 'u8[16384]{0}', space=vmem, size = 0x4000, scoped, tag = 'input window, operand 4, single buffered']
    #allocation12 [shape = 'u8[512]{0}', space=vmem, size = 0x400, scoped, tag = 'input window, operand 5, single buffered']
    #allocation13 [shape = 's32[1]{0}', space=sflag, size = 0x4, scoped, tag = 'scoped memory for tpu_custom_call.1']
    #allocation14 [shape = 'u8[16384]{0}', space=vmem, size = 0x4000, scoped, tag = 'output window, operand 0, single buffered']
    %11 = vsyncpa [#allocation4], 0
    %12 = vsyncpa [#allocation7], 0
    %13 = vsyncpa [#allocation10], 0
    %14 = vsyncpa [#allocation13], 0
    %15 = vsyncpa [#allocation5], 0
    // Predicated region
    $region2: #{tpu_custom_call.1} parent=1 // pred_check
      _
    $region3: #{tpu_custom_call.1} parent=1 // pred_check_branch
      %17 = sbr.rel (0) target = $region5
    $region4: #{tpu_custom_call.1} parent=1 // pred_region
      %s19 = ssub.s32 512, 512
      %20 = vsyncadd [#allocation4], %s19
      %s21 = sshll.u32 [#allocation3], 4
      %s22 = int_to_ptr.vmem [resolvable:$true] %s21
      %27 = dma.hbm_to_vmem [thread:$0]  %s0, 512, %s22, [#allocation4], 128, 128, 8
    $region5: #{tpu_custom_call.1} parent=1 // pred_fallthru
      _
    // Predicated region
    $region6: #{tpu_custom_call.1} parent=1 // pred_check
      _
    $region7: #{tpu_custom_call.1} parent=1 // pred_check_branch
      %29 = sbr.rel (0) target = $region9
    $region8: #{tpu_custom_call.1} parent=1 // pred_region
      %s31 = ssub.s32 512, 512
      %32 = vsyncadd [#allocation7], %s31
      %s33 = sshll.u32 [#allocation6], 4
      %s34 = int_to_ptr.vmem [resolvable:$true] %s33
      %39 = dma.hbm_to_vmem [thread:$0]  %s1, 512, %s34, [#allocation7], 128, 128, 8
    $region9: #{tpu_custom_call.1} parent=1 // pred_fallthru
      _
    // Predicated region
    $region10: #{tpu_custom_call.1} parent=1 // pred_check
      _
    $region11: #{tpu_custom_call.1} parent=1 // pred_check_branch
      %41 = sbr.rel (0) target = $region13
    $region12: #{tpu_custom_call.1} parent=1 // pred_region
      %s43 = ssub.s32 128, 128
      %44 = vsyncadd [#allocation7], %s43
      %s46 = sshll.u32 [#allocation8], 4
      %s47 = int_to_ptr.vmem [resolvable:$true] %s46
      %49 = dma.hbm_to_vmem [thread:$0]  %s2, 128, %s47, [#allocation7]
    $region13: #{tpu_custom_call.1} parent=1 // pred_fallthru
      _
    // Predicated region
    $region14: #{tpu_custom_call.1} parent=1 // pred_check
      _
    $region15: #{tpu_custom_call.1} parent=1 // pred_check_branch
      %51 = sbr.rel (0) target = $region17
    $region16: #{tpu_custom_call.1} parent=1 // pred_region
      %s53 = ssub.s32 512, 512
      %54 = vsyncadd [#allocation10], %s53
      %s55 = sshll.u32 [#allocation9], 4
      %s56 = int_to_ptr.vmem [resolvable:$true] %s55
      %61 = dma.hbm_to_vmem [thread:$0]  %s3, 512, %s56, [#allocation10], 128, 128, 8
    $region17: #{tpu_custom_call.1} parent=1 // pred_fallthru
      _
    // Predicated region
    $region18: #{tpu_custom_call.1} parent=1 // pred_check
      _
    $region19: #{tpu_custom_call.1} parent=1 // pred_check_branch
      %63 = sbr.rel (0) target = $region21
    $region20: #{tpu_custom_call.1} parent=1 // pred_region
      %s65 = ssub.s32 512, 512
      %66 = vsyncadd [#allocation10], %s65
      %s67 = sshll.u32 [#allocation11], 4
      %s68 = int_to_ptr.vmem [resolvable:$true] %s67
      %73 = dma.hbm_to_vmem [thread:$0]  %s4, 512, %s68, [#allocation10], 128, 128, 8
    $region21: #{tpu_custom_call.1} parent=1 // pred_fallthru
      _
    // Predicated region
    $region22: #{tpu_custom_call.1} parent=1 // pred_check
      _
    $region23: #{tpu_custom_call.1} parent=1 // pred_check_branch
      %75 = sbr.rel (0) target = $region25
    $region24: #{tpu_custom_call.1} parent=1 // pred_region
      %s77 = ssub.s32 16, 16
      %78 = vsyncadd [#allocation13], %s77
      %s80 = sshll.u32 [#allocation12], 4
      %s81 = int_to_ptr.vmem [resolvable:$true] %s80
      %83 = dma.hbm_to_vmem [thread:$0]  %s5, 16, %s81, [#allocation13]
    $region25: #{tpu_custom_call.1} parent=1 // pred_fallthru
      _
    // Predicated region
    $region26: #{tpu_custom_call.1} parent=1 // pred_check
      _
    $region27: #{tpu_custom_call.1} parent=1 // pred_check_branch
      %85 = sbr.rel (0) target = $region29
    $region28: #{tpu_custom_call.1} parent=1 // pred_region
      %86 = dma.done [#allocation4], 512
    $region29: #{tpu_custom_call.1} parent=1 // pred_fallthru
      _
    // Predicated region
    $region30: #{tpu_custom_call.1} parent=1 // pred_check
      _
    $region31: #{tpu_custom_call.1} parent=1 // pred_check_branch
      %88 = sbr.rel (0) target = $region33
    $region32: #{tpu_custom_call.1} parent=1 // pred_region
      %89 = dma.done [#allocation7], 512
    $region33: #{tpu_custom_call.1} parent=1 // pred_fallthru
      _
    // Predicated region
    $region34: #{tpu_custom_call.1} parent=1 // pred_check
      _
    $region35: #{tpu_custom_call.1} parent=1 // pred_check_branch
      %91 = sbr.rel (0) target = $region37
    $region36: #{tpu_custom_call.1} parent=1 // pred_region
      %92 = dma.done [#allocation7], 128
    $region37: #{tpu_custom_call.1} parent=1 // pred_fallthru
      _
    // Predicated region
    $region38: #{tpu_custom_call.1} parent=1 // pred_check
      _
    $region39: #{tpu_custom_call.1} parent=1 // pred_check_branch
      %94 = sbr.rel (0) target = $region41
    $region40: #{tpu_custom_call.1} parent=1 // pred_region
      %95 = dma.done [#allocation10], 512
    $region41: #{tpu_custom_call.1} parent=1 // pred_fallthru
      _
    // Predicated region
    $region42: #{tpu_custom_call.1} parent=1 // pred_check
      _
    $region43: #{tpu_custom_call.1} parent=1 // pred_check_branch
      %97 = sbr.rel (0) target = $region45
    $region44: #{tpu_custom_call.1} parent=1 // pred_region
      %98 = dma.done [#allocation10], 512
    $region45: #{tpu_custom_call.1} parent=1 // pred_fallthru
      _
    // Predicated region
    $region46: #{tpu_custom_call.1} parent=1 // pred_check
      _
    $region47: #{tpu_custom_call.1} parent=1 // pred_check_branch
      %100 = sbr.rel (0) target = $region49
    $region48: #{tpu_custom_call.1} parent=1 // pred_region
      %101 = dma.done [#allocation13], 16
    $region49: #{tpu_custom_call.1} parent=1 // pred_fallthru
      _
    %p102 = scmp.eq.s32.totalorder 0, 0
    // Predicated region
    $region50: #{tpu_custom_call.1} parent=1 // pred_check
      %p103 = pneg %p102
    $region51: #{tpu_custom_call.1} parent=1 // pred_check_branch
      %105 = sbr.rel (%p103) target = $region53
    $region52: #{tpu_custom_call.1} parent=1 // pred_region
      %106 = vst [vmem:[#allocation2] sm:$0xff] 0.0
      %107 = vst [vmem:[#allocation2 + $0x8] sm:$0xff] 0.0
      %108 = vst [vmem:[#allocation2 + $0x10] sm:$0xff] 0.0
      %109 = vst [vmem:[#allocation2 + $0x18] sm:$0xff] 0.0
    $region53: #{tpu_custom_call.1} parent=1 // pred_fallthru
      _
    %v110 = vld [vmem:[#allocation9] sm:$0xff]
    %v111 = vld [vmem:[#allocation9 + $0x8] sm:$0xff]
    %v112 = vld [vmem:[#allocation6] sm:$0xff]
    %v113 = vld [vmem:[#allocation6 + $0x8] sm:$0xff]
    %v114 = vld [vmem:[#allocation8] sm:$0xff]
    %vm115 = vcmask 64512
    %v117 = vsel %vm115, %v112, 0
    %v120 = vsel %vm115, %v113, 0
    %122 = vmatprep.subr.mxu0 0.0
    %123 = vmatpush1.msra.mxu0 %v114
    %124 = vmatprep.subr.mxu0 0.0
    %125 = vmatpush1.msra.mxu0 0.0
    %126 = vmatprep.subr.mxu0 0.0
    %127 = vmatpush1.msra.mxu0 0.0
    %128 = vmatprep.subr.mxu0 0.0
    %129 = vmatpush1.msra.mxu0 0.0
    %130 = vmatprep.subr.mxu0 0.0
    %131 = vmatpush1.msra.mxu0 0.0
    %132 = vmatprep.subr.mxu0 0.0
    %133 = vmatpush1.msra.mxu0 0.0
    %134 = vmatprep.subr.mxu0 0.0
    %135 = vmatpush1.msra.mxu0 0.0
    %136 = vmatprep.subr.mxu0 0.0
    %137 = vmatpush1.msra.mxu0 0.0
    %138 = vmatprep.subr.mxu0 0.0
    %139 = vmatpush1.msra.mxu0 0.0
    %140 = vmatprep.subr.mxu0 0.0
    %141 = vmatpush1.msra.mxu0 0.0
    %142 = vmatprep.subr.mxu0 0.0
    %143 = vmatpush1.msra.mxu0 0.0
    %144 = vmatprep.subr.mxu0 0.0
    %145 = vmatpush1.msra.mxu0 0.0
    %146 = vmatprep.subr.mxu0 0.0
    %147 = vmatpush1.msra.mxu0 0.0
    %148 = vmatprep.subr.mxu0 0.0
    %149 = vmatpush1.msra.mxu0 0.0
    %150 = vmatprep.subr.mxu0 0.0
    %151 = vmatpush1.msra.mxu0 0.0
    %152 = vmatprep.subr.mxu0 0.0
    %153 = vmatpush1.msra.mxu0 0.0
    %154 = vmatprep.subr.mxu0 0.0
    %155 = vmatpush1.msra.mxu0 0.0
    %156 = vmatprep.subr.mxu0 0.0
    %157 = vmatpush1.msra.mxu0 0.0
    %158 = vmatprep.subr.mxu0 0.0
    %159 = vmatpush1.msra.mxu0 0.0
    %160 = vmatprep.subr.mxu0 0.0
    %161 = vmatpush1.msra.mxu0 0.0
    %162 = vmatprep.subr.mxu0 0.0
    %163 = vmatpush1.msra.mxu0 0.0
    %164 = vmatprep.subr.mxu0 0.0
    %165 = vmatpush1.msra.mxu0 0.0
    %166 = vmatprep.subr.mxu0 0.0
    %167 = vmatpush1.msra.mxu0 0.0
    %168 = vmatprep.subr.mxu0 0.0
    %169 = vmatpush1.msra.mxu0 0.0
    %170 = vmatprep.subr.mxu0 0.0
    %171 = vmatpush1.msra.mxu0 0.0
    %172 = vmatprep.subr.mxu0 0.0
    %173 = vmatpush1.msra.mxu0 0.0
    %174 = vmatprep.subr.mxu0 0.0
    %175 = vmatpush1.msra.mxu0 0.0
    %176 = vmatprep.subr.mxu0 0.0
    %177 = vmatpush1.msra.mxu0 0.0
    %178 = vmatprep.subr.mxu0 0.0
    %179 = vmatpush1.msra.mxu0 0.0
    %180 = vmatprep.subr.mxu0 0.0
    %181 = vmatpush1.msra.mxu0 0.0
    %182 = vmatprep.subr.mxu0 0.0
    %183 = vmatpush1.msra.mxu0 0.0
    %184 = vmatprep.subr.mxu0 0.0
    %185 = vmatpush1.msra.mxu0 0.0
    %186 = vmatprep.mubr.f32.mxu0 0.0
    %187 = vmatmul.mubr.f32.gmra.mrb[0].mxu0 %v117
    %v188 = vpop.f32.mrb[0].mxu0
    %v189 = vadd.f32 0.0, %v188
    %v190 = vpop.f32.mrb[0].mxu0
    %191 = vmatprep.mubr.f32.mxu0 0.0
    %192 = vmatmul.mubr.f32.gmra.mrb[0].mxu0 %v120
    %v193 = vpop.f32.mrb[0].mxu0
    %v194 = vadd.f32 0.0, %v193
    %v195 = vpop.f32.mrb[0].mxu0
    %196 = vdwg.mxu0
    %198 = vset.pattern.permute.xlu0 0
    %199 = vperm.xlu0 %198, %v110
    %v200 = vpop.permute.xlu0 %199
    %203 = vset.pattern.permute.xlu0 0
    %204 = vperm.xlu0 %203, %v111
    %v205 = vpop.permute.xlu0 %204
    %v207 = vmul.f32 %v200, %v189
    %v208 = vmul.f32 %v205, %v194
    %s209 = scalar_lea.vmem [#allocation9], 16
    %v210 = vld [vmem:[%s209] sm:$0xff]
    %v211 = vld [vmem:[%s209 + $0x8] sm:$0xff]
    %s212 = scalar_lea.vmem [#allocation6], 16
    %v213 = vld [vmem:[%s212] sm:$0xff]
    %v214 = vld [vmem:[%s212 + $0x8] sm:$0xff]
    %v216 = vsel %vm115, %v213, 0
    %v219 = vsel %vm115, %v214, 0
    %221 = vmatprep.subr.mxu0 0.0
    %222 = vmatpush1.msra.mxu0 %v114
    %223 = vmatprep.subr.mxu0 0.0
    %224 = vmatpush1.msra.mxu0 0.0
    %225 = vmatprep.subr.mxu0 0.0
    %226 = vmatpush1.msra.mxu0 0.0
    %227 = vmatprep.subr.mxu0 0.0
    %228 = vmatpush1.msra.mxu0 0.0
    %229 = vmatprep.subr.mxu0 0.0
    %230 = vmatpush1.msra.mxu0 0.0
    %231 = vmatprep.subr.mxu0 0.0
    %232 = vmatpush1.msra.mxu0 0.0
    %233 = vmatprep.subr.mxu0 0.0
    %234 = vmatpush1.msra.mxu0 0.0
    %235 = vmatprep.subr.mxu0 0.0
    %236 = vmatpush1.msra.mxu0 0.0
    %237 = vmatprep.subr.mxu0 0.0
    %238 = vmatpush1.msra.mxu0 0.0
    %239 = vmatprep.subr.mxu0 0.0
    %240 = vmatpush1.msra.mxu0 0.0
    %241 = vmatprep.subr.mxu0 0.0
    %242 = vmatpush1.msra.mxu0 0.0
    %243 = vmatprep.subr.mxu0 0.0
    %244 = vmatpush1.msra.mxu0 0.0
    %245 = vmatprep.subr.mxu0 0.0
    %246 = vmatpush1.msra.mxu0 0.0
    %247 = vmatprep.subr.mxu0 0.0
    %248 = vmatpush1.msra.mxu0 0.0
    %249 = vmatprep.subr.mxu0 0.0
    %250 = vmatpush1.msra.mxu0 0.0
    %251 = vmatprep.subr.mxu0 0.0
    %252 = vmatpush1.msra.mxu0 0.0
    %253 = vmatprep.subr.mxu0 0.0
    %254 = vmatpush1.msra.mxu0 0.0
    %255 = vmatprep.subr.mxu0 0.0
    %256 = vmatpush1.msra.mxu0 0.0
    %257 = vmatprep.subr.mxu0 0.0
    %258 = vmatpush1.msra.mxu0 0.0
    %259 = vmatprep.subr.mxu0 0.0
    %260 = vmatpush1.msra.mxu0 0.0
    %261 = vmatprep.subr.mxu0 0.0
    %262 = vmatpush1.msra.mxu0 0.0
    %263 = vmatprep.subr.mxu0 0.0
    %264 = vmatpush1.msra.mxu0 0.0
    %265 = vmatprep.subr.mxu0 0.0
    %266 = vmatpush1.msra.mxu0 0.0
    %267 = vmatprep.subr.mxu0 0.0
    %268 = vmatpush1.msra.mxu0 0.0
    %269 = vmatprep.subr.mxu0 0.0
    %270 = vmatpush1.msra.mxu0 0.0
    %271 = vmatprep.subr.mxu0 0.0
    %272 = vmatpush1.msra.mxu0 0.0
    %273 = vmatprep.subr.mxu0 0.0
    %274 = vmatpush1.msra.mxu0 0.0
    %275 = vmatprep.subr.mxu0 0.0
    %276 = vmatpush1.msra.mxu0 0.0
    %277 = vmatprep.subr.mxu0 0.0
    %278 = vmatpush1.msra.mxu0 0.0
    %279 = vmatprep.subr.mxu0 0.0
    %280 = vmatpush1.msra.mxu0 0.0
    %281 = vmatprep.subr.mxu0 0.0
    %282 = vmatpush1.msra.mxu0 0.0
    %283 = vmatprep.subr.mxu0 0.0
    %284 = vmatpush1.msra.mxu0 0.0
    %285 = vmatprep.mubr.f32.mxu0 0.0
    %286 = vmatmul.mubr.f32.gmra.mrb[0].mxu0 %v216
    %v287 = vpop.f32.mrb[0].mxu0
    %v288 = vadd.f32 0.0, %v287
    %v289 = vpop.f32.mrb[0].mxu0
    %290 = vmatprep.mubr.f32.mxu0 0.0
    %291 = vmatmul.mubr.f32.gmra.mrb[0].mxu0 %v219
    %v292 = vpop.f32.mrb[0].mxu0
    %v293 = vadd.f32 0.0, %v292
    %v294 = vpop.f32.mrb[0].mxu0
    %295 = vdwg.mxu0
    %297 = vset.pattern.permute.xlu0 0
    %298 = vperm.xlu0 %297, %v210
    %v299 = vpop.permute.xlu0 %298
    %302 = vset.pattern.permute.xlu0 0
    %303 = vperm.xlu0 %302, %v211
    %v304 = vpop.permute.xlu0 %303
    %v306 = vmul.f32 %v299, %v288
    %v307 = vmul.f32 %v304, %v293
    %p308 = scmp.eq.s32.totalorder 0, 0
    // Predicated region
    $region54: #{tpu_custom_call.1} parent=1 // pred_check
      %p309 = pneg %p308
    $region55: #{tpu_custom_call.1} parent=1 // pred_check_branch
      %311 = sbr.rel (%p309) target = $region57
    $region56: #{tpu_custom_call.1} parent=1 // pred_region
      %v312 = vlaneseq
      %v313 = vshrl.u32 %v312, 7
      %v314 = vadd.s32 %v313, 8
      %v315 = vlaneseq
      %v316 = vand.u32 %v315, 127
      %vm317 = vcmp.eq.s32.totalorder %v313, %v316
      %vm318 = vcmp.eq.s32.totalorder %v314, %v316
      %v319 = vld [vmem:[#allocation3] sm:$0xff]
      %v320 = vld [vmem:[#allocation3 + $0x8] sm:$0xff]
      %v321 = vsel %vm317, 1.0, %v319
      %v322 = vsel %vm318, 1.0, %v320
      %v323 = vld [vmem:[#allocation2] sm:$0xff]
      %v324 = vld [vmem:[#allocation2 + $0x8] sm:$0xff]
      %vm325 = vcmask 130048
      %v327 = vsel %vm325, %v321, 0
      %v330 = vsel %vm325, %v322, 0
      %332 = vmatprep.subr.mxu0 0.0
      %333 = vmatpush1.msra.mxu0 %v207
      %334 = vmatprep.subr.mxu0 0.0
      %335 = vmatpush1.msra.mxu0 %v208
      %336 = vmatprep.subr.mxu0 0.0
      %337 = vmatpush1.msra.mxu0 0.0
      %338 = vmatprep.subr.mxu0 0.0
      %339 = vmatpush1.msra.mxu0 0.0
      %340 = vmatprep.subr.mxu0 0.0
      %341 = vmatpush1.msra.mxu0 0.0
      %342 = vmatprep.subr.mxu0 0.0
      %343 = vmatpush1.msra.mxu0 0.0
      %344 = vmatprep.subr.mxu0 0.0
      %345 = vmatpush1.msra.mxu0 0.0
      %346 = vmatprep.subr.mxu0 0.0
      %347 = vmatpush1.msra.mxu0 0.0
      %348 = vmatprep.subr.mxu0 0.0
      %349 = vmatpush1.msra.mxu0 0.0
      %350 = vmatprep.subr.mxu0 0.0
      %351 = vmatpush1.msra.mxu0 0.0
      %352 = vmatprep.subr.mxu0 0.0
      %353 = vmatpush1.msra.mxu0 0.0
      %354 = vmatprep.subr.mxu0 0.0
      %355 = vmatpush1.msra.mxu0 0.0
      %356 = vmatprep.subr.mxu0 0.0
      %357 = vmatpush1.msra.mxu0 0.0
      %358 = vmatprep.subr.mxu0 0.0
      %359 = vmatpush1.msra.mxu0 0.0
      %360 = vmatprep.subr.mxu0 0.0
      %361 = vmatpush1.msra.mxu0 0.0
      %362 = vmatprep.subr.mxu0 0.0
      %363 = vmatpush1.msra.mxu0 0.0
      %364 = vmatprep.subr.mxu0 0.0
      %365 = vmatpush1.msra.mxu0 0.0
      %366 = vmatprep.subr.mxu0 0.0
      %367 = vmatpush1.msra.mxu0 0.0
      %368 = vmatprep.subr.mxu0 0.0
      %369 = vmatpush1.msra.mxu0 0.0
      %370 = vmatprep.subr.mxu0 0.0
      %371 = vmatpush1.msra.mxu0 0.0
      %372 = vmatprep.subr.mxu0 0.0
      %373 = vmatpush1.msra.mxu0 0.0
      %374 = vmatprep.subr.mxu0 0.0
      %375 = vmatpush1.msra.mxu0 0.0
      %376 = vmatprep.subr.mxu0 0.0
      %377 = vmatpush1.msra.mxu0 0.0
      %378 = vmatprep.subr.mxu0 0.0
      %379 = vmatpush1.msra.mxu0 0.0
      %380 = vmatprep.subr.mxu0 0.0
      %381 = vmatpush1.msra.mxu0 0.0
      %382 = vmatprep.subr.mxu0 0.0
      %383 = vmatpush1.msra.mxu0 0.0
      %384 = vmatprep.subr.mxu0 0.0
      %385 = vmatpush1.msra.mxu0 0.0
      %386 = vmatprep.subr.mxu0 0.0
      %387 = vmatpush1.msra.mxu0 0.0
      %388 = vmatprep.subr.mxu0 0.0
      %389 = vmatpush1.msra.mxu0 0.0
      %390 = vmatprep.subr.mxu0 0.0
      %391 = vmatpush1.msra.mxu0 0.0
      %392 = vmatprep.subr.mxu0 0.0
      %393 = vmatpush1.msra.mxu0 0.0
      %394 = vmatprep.subr.mxu0 0.0
      %395 = vmatpush1.msra.mxu0 0.0
      %396 = vmatprep.mubr.f32.mxu0 0.0
      %397 = vmatmul.mubr.f32.gmra.mrb[0].mxu0 %v327
      %v398 = vpop.f32.mrb[0].mxu0
      %v399 = vadd.f32 0.0, %v398
      %v400 = vpop.f32.mrb[0].mxu0
      %401 = vmatprep.mubr.f32.mxu0 0.0
      %402 = vmatmul.mubr.f32.gmra.mrb[0].mxu0 %v330
      %v403 = vpop.f32.mrb[0].mxu0
      %v404 = vadd.f32 0.0, %v403
      %v405 = vpop.f32.mrb[0].mxu0
      %406 = vdwg.mxu0
      %v407 = vadd.f32 %v323, %v399
      %v408 = vadd.f32 %v324, %v404
      %409 = vst [vmem:[#allocation2] sm:$0xff] %v407
      %410 = vst [vmem:[#allocation2 + $0x8] sm:$0xff] %v408
      %s411 = scalar_lea.vmem [#allocation3], 16
      %v412 = vld [vmem:[%s411] sm:$0xff]
      %v413 = vld [vmem:[%s411 + $0x8] sm:$0xff]
      %v414 = vsel %vm317, 1.0, %v412
      %v415 = vsel %vm318, 1.0, %v413
      %s416 = scalar_lea.vmem [#allocation2], 16
      %v417 = vld [vmem:[%s416] sm:$0xff]
      %v418 = vld [vmem:[%s416 + $0x8] sm:$0xff]
      %v420 = vsel %vm325, %v414, 0
      %v423 = vsel %vm325, %v415, 0
      %425 = vmatprep.subr.mxu0 0.0
      %426 = vmatpush1.msra.mxu0 %v306
      %427 = vmatprep.subr.mxu0 0.0
      %428 = vmatpush1.msra.mxu0 %v307
      %429 = vmatprep.subr.mxu0 0.0
      %430 = vmatpush1.msra.mxu0 0.0
      %431 = vmatprep.subr.mxu0 0.0
      %432 = vmatpush1.msra.mxu0 0.0
      %433 = vmatprep.subr.mxu0 0.0
      %434 = vmatpush1.msra.mxu0 0.0
      %435 = vmatprep.subr.mxu0 0.0
      %436 = vmatpush1.msra.mxu0 0.0
      %437 = vmatprep.subr.mxu0 0.0
      %438 = vmatpush1.msra.mxu0 0.0
      %439 = vmatprep.subr.mxu0 0.0
      %440 = vmatpush1.msra.mxu0 0.0
      %441 = vmatprep.subr.mxu0 0.0
      %442 = vmatpush1.msra.mxu0 0.0
      %443 = vmatprep.subr.mxu0 0.0
      %444 = vmatpush1.msra.mxu0 0.0
      %445 = vmatprep.subr.mxu0 0.0
      %446 = vmatpush1.msra.mxu0 0.0
      %447 = vmatprep.subr.mxu0 0.0
      %448 = vmatpush1.msra.mxu0 0.0
      %449 = vmatprep.subr.mxu0 0.0
      %450 = vmatpush1.msra.mxu0 0.0
      %451 = vmatprep.subr.mxu0 0.0
      %452 = vmatpush1.msra.mxu0 0.0
      %453 = vmatprep.subr.mxu0 0.0
      %454 = vmatpush1.msra.mxu0 0.0
      %455 = vmatprep.subr.mxu0 0.0
      %456 = vmatpush1.msra.mxu0 0.0
      %457 = vmatprep.subr.mxu0 0.0
      %458 = vmatpush1.msra.mxu0 0.0
      %459 = vmatprep.subr.mxu0 0.0
      %460 = vmatpush1.msra.mxu0 0.0
      %461 = vmatprep.subr.mxu0 0.0
      %462 = vmatpush1.msra.mxu0 0.0
      %463 = vmatprep.subr.mxu0 0.0
      %464 = vmatpush1.msra.mxu0 0.0
      %465 = vmatprep.subr.mxu0 0.0
      %466 = vmatpush1.msra.mxu0 0.0
      %467 = vmatprep.subr.mxu0 0.0
      %468 = vmatpush1.msra.mxu0 0.0
      %469 = vmatprep.subr.mxu0 0.0
      %470 = vmatpush1.msra.mxu0 0.0
      %471 = vmatprep.subr.mxu0 0.0
      %472 = vmatpush1.msra.mxu0 0.0
      %473 = vmatprep.subr.mxu0 0.0
      %474 = vmatpush1.msra.mxu0 0.0
      %475 = vmatprep.subr.mxu0 0.0
      %476 = vmatpush1.msra.mxu0 0.0
      %477 = vmatprep.subr.mxu0 0.0
      %478 = vmatpush1.msra.mxu0 0.0
      %479 = vmatprep.subr.mxu0 0.0
      %480 = vmatpush1.msra.mxu0 0.0
      %481 = vmatprep.subr.mxu0 0.0
      %482 = vmatpush1.msra.mxu0 0.0
      %483 = vmatprep.subr.mxu0 0.0
      %484 = vmatpush1.msra.mxu0 0.0
      %485 = vmatprep.subr.mxu0 0.0
      %486 = vmatpush1.msra.mxu0 0.0
      %487 = vmatprep.subr.mxu0 0.0
      %488 = vmatpush1.msra.mxu0 0.0
      %489 = vmatprep.mubr.f32.mxu0 0.0
      %490 = vmatmul.mubr.f32.gmra.mrb[0].mxu0 %v420
      %v491 = vpop.f32.mrb[0].mxu0
      %v492 = vadd.f32 0.0, %v491
      %v493 = vpop.f32.mrb[0].mxu0
      %494 = vmatprep.mubr.f32.mxu0 0.0
      %495 = vmatmul.mubr.f32.gmra.mrb[0].mxu0 %v423
      %v496 = vpop.f32.mrb[0].mxu0
      %v497 = vadd.f32 0.0, %v496
      %v498 = vpop.f32.mrb[0].mxu0
      %499 = vdwg.mxu0
      %v500 = vadd.f32 %v417, %v492
      %v501 = vadd.f32 %v418, %v497
      %502 = vst [vmem:[%s416] sm:$0xff] %v500
      %503 = vst [vmem:[%s416 + $0x8] sm:$0xff] %v501
    $region57: #{tpu_custom_call.1} parent=1 // pred_fallthru
      _
    %p504 = scmp.ne.s32.totalorder 0, 0
    // Predicated region
    $region58: #{tpu_custom_call.1} parent=1 // pred_check
      %p505 = pneg %p504
    $region59: #{tpu_custom_call.1} parent=1 // pred_check_branch
      %507 = sbr.rel (%p505) target = $region61
    $region60: #{tpu_custom_call.1} parent=1 // pred_region
      %v508 = vld [vmem:[#allocation3] sm:$0xff]
      %v509 = vld [vmem:[#allocation3 + $0x8] sm:$0xff]
      %v510 = vld [vmem:[#allocation2] sm:$0xff]
      %v511 = vld [vmem:[#allocation2 + $0x8] sm:$0xff]
      %vm512 = vcmask 130048
      %v514 = vsel %vm512, %v508, 0
      %v517 = vsel %vm512, %v509, 0
      %519 = vmatprep.subr.mxu0 0.0
      %520 = vmatpush1.msra.mxu0 %v207
      %521 = vmatprep.subr.mxu0 0.0
      %522 = vmatpush1.msra.mxu0 %v208
      %523 = vmatprep.subr.mxu0 0.0
      %524 = vmatpush1.msra.mxu0 0.0
      %525 = vmatprep.subr.mxu0 0.0
      %526 = vmatpush1.msra.mxu0 0.0
      %527 = vmatprep.subr.mxu0 0.0
      %528 = vmatpush1.msra.mxu0 0.0
      %529 = vmatprep.subr.mxu0 0.0
      %530 = vmatpush1.msra.mxu0 0.0
      %531 = vmatprep.subr.mxu0 0.0
      %532 = vmatpush1.msra.mxu0 0.0
      %533 = vmatprep.subr.mxu0 0.0
      %534 = vmatpush1.msra.mxu0 0.0
      %535 = vmatprep.subr.mxu0 0.0
      %536 = vmatpush1.msra.mxu0 0.0
      %537 = vmatprep.subr.mxu0 0.0
      %538 = vmatpush1.msra.mxu0 0.0
      %539 = vmatprep.subr.mxu0 0.0
      %540 = vmatpush1.msra.mxu0 0.0
      %541 = vmatprep.subr.mxu0 0.0
      %542 = vmatpush1.msra.mxu0 0.0
      %543 = vmatprep.subr.mxu0 0.0
      %544 = vmatpush1.msra.mxu0 0.0
      %545 = vmatprep.subr.mxu0 0.0
      %546 = vmatpush1.msra.mxu0 0.0
      %547 = vmatprep.subr.mxu0 0.0
      %548 = vmatpush1.msra.mxu0 0.0
      %549 = vmatprep.subr.mxu0 0.0
      %550 = vmatpush1.msra.mxu0 0.0
      %551 = vmatprep.subr.mxu0 0.0
      %552 = vmatpush1.msra.mxu0 0.0
      %553 = vmatprep.subr.mxu0 0.0
      %554 = vmatpush1.msra.mxu0 0.0
      %555 = vmatprep.subr.mxu0 0.0
      %556 = vmatpush1.msra.mxu0 0.0
      %557 = vmatprep.subr.mxu0 0.0
      %558 = vmatpush1.msra.mxu0 0.0
      %559 = vmatprep.subr.mxu0 0.0
      %560 = vmatpush1.msra.mxu0 0.0
      %561 = vmatprep.subr.mxu0 0.0
      %562 = vmatpush1.msra.mxu0 0.0
      %563 = vmatprep.subr.mxu0 0.0
      %564 = vmatpush1.msra.mxu0 0.0
      %565 = vmatprep.subr.mxu0 0.0
      %566 = vmatpush1.msra.mxu0 0.0
      %567 = vmatprep.subr.mxu0 0.0
      %568 = vmatpush1.msra.mxu0 0.0
      %569 = vmatprep.subr.mxu0 0.0
      %570 = vmatpush1.msra.mxu0 0.0
      %571 = vmatprep.subr.mxu0 0.0
      %572 = vmatpush1.msra.mxu0 0.0
      %573 = vmatprep.subr.mxu0 0.0
      %574 = vmatpush1.msra.mxu0 0.0
      %575 = vmatprep.subr.mxu0 0.0
      %576 = vmatpush1.msra.mxu0 0.0
      %577 = vmatprep.subr.mxu0 0.0
      %578 = vmatpush1.msra.mxu0 0.0
      %579 = vmatprep.subr.mxu0 0.0
      %580 = vmatpush1.msra.mxu0 0.0
      %581 = vmatprep.subr.mxu0 0.0
      %582 = vmatpush1.msra.mxu0 0.0
      %583 = vmatprep.mubr.f32.mxu0 0.0
      %584 = vmatmul.mubr.f32.gmra.mrb[0].mxu0 %v514
      %v585 = vpop.f32.mrb[0].mxu0
      %v586 = vadd.f32 0.0, %v585
      %v587 = vpop.f32.mrb[0].mxu0
      %588 = vmatprep.mubr.f32.mxu0 0.0
      %589 = vmatmul.mubr.f32.gmra.mrb[0].mxu0 %v517
      %v590 = vpop.f32.mrb[0].mxu0
      %v591 = vadd.f32 0.0, %v590
      %v592 = vpop.f32.mrb[0].mxu0
      %593 = vdwg.mxu0
      %v594 = vadd.f32 %v510, %v586
      %v595 = vadd.f32 %v511, %v591
      %596 = vst [vmem:[#allocation2] sm:$0xff] %v594
      %597 = vst [vmem:[#allocation2 + $0x8] sm:$0xff] %v595
      %s598 = scalar_lea.vmem [#allocation3], 16
      %v599 = vld [vmem:[%s598] sm:$0xff]
      %v600 = vld [vmem:[%s598 + $0x8] sm:$0xff]
      %s601 = scalar_lea.vmem [#allocation2], 16
      %v602 = vld [vmem:[%s601] sm:$0xff]
      %v603 = vld [vmem:[%s601 + $0x8] sm:$0xff]
      %v605 = vsel %vm512, %v599, 0
      %v608 = vsel %vm512, %v600, 0
      %610 = vmatprep.subr.mxu0 0.0
      %611 = vmatpush1.msra.mxu0 %v306
      %612 = vmatprep.subr.mxu0 0.0
      %613 = vmatpush1.msra.mxu0 %v307
      %614 = vmatprep.subr.mxu0 0.0
      %615 = vmatpush1.msra.mxu0 0.0
      %616 = vmatprep.subr.mxu0 0.0
      %617 = vmatpush1.msra.mxu0 0.0
      %618 = vmatprep.subr.mxu0 0.0
      %619 = vmatpush1.msra.mxu0 0.0
      %620 = vmatprep.subr.mxu0 0.0
      %621 = vmatpush1.msra.mxu0 0.0
      %622 = vmatprep.subr.mxu0 0.0
      %623 = vmatpush1.msra.mxu0 0.0
      %624 = vmatprep.subr.mxu0 0.0
      %625 = vmatpush1.msra.mxu0 0.0
      %626 = vmatprep.subr.mxu0 0.0
      %627 = vmatpush1.msra.mxu0 0.0
      %628 = vmatprep.subr.mxu0 0.0
      %629 = vmatpush1.msra.mxu0 0.0
      %630 = vmatprep.subr.mxu0 0.0
      %631 = vmatpush1.msra.mxu0 0.0
      %632 = vmatprep.subr.mxu0 0.0
      %633 = vmatpush1.msra.mxu0 0.0
      %634 = vmatprep.subr.mxu0 0.0
      %635 = vmatpush1.msra.mxu0 0.0
      %636 = vmatprep.subr.mxu0 0.0
      %637 = vmatpush1.msra.mxu0 0.0
      %638 = vmatprep.subr.mxu0 0.0
      %639 = vmatpush1.msra.mxu0 0.0
      %640 = vmatprep.subr.mxu0 0.0
      %641 = vmatpush1.msra.mxu0 0.0
      %642 = vmatprep.subr.mxu0 0.0
      %643 = vmatpush1.msra.mxu0 0.0
      %644 = vmatprep.subr.mxu0 0.0
      %645 = vmatpush1.msra.mxu0 0.0
      %646 = vmatprep.subr.mxu0 0.0
      %647 = vmatpush1.msra.mxu0 0.0
      %648 = vmatprep.subr.mxu0 0.0
      %649 = vmatpush1.msra.mxu0 0.0
      %650 = vmatprep.subr.mxu0 0.0
      %651 = vmatpush1.msra.mxu0 0.0
      %652 = vmatprep.subr.mxu0 0.0
      %653 = vmatpush1.msra.mxu0 0.0
      %654 = vmatprep.subr.mxu0 0.0
      %655 = vmatpush1.msra.mxu0 0.0
      %656 = vmatprep.subr.mxu0 0.0
      %657 = vmatpush1.msra.mxu0 0.0
      %658 = vmatprep.subr.mxu0 0.0
      %659 = vmatpush1.msra.mxu0 0.0
      %660 = vmatprep.subr.mxu0 0.0
      %661 = vmatpush1.msra.mxu0 0.0
      %662 = vmatprep.subr.mxu0 0.0
      %663 = vmatpush1.msra.mxu0 0.0
      %664 = vmatprep.subr.mxu0 0.0
      %665 = vmatpush1.msra.mxu0 0.0
      %666 = vmatprep.subr.mxu0 0.0
      %667 = vmatpush1.msra.mxu0 0.0
      %668 = vmatprep.subr.mxu0 0.0
      %669 = vmatpush1.msra.mxu0 0.0
      %670 = vmatprep.subr.mxu0 0.0
      %671 = vmatpush1.msra.mxu0 0.0
      %672 = vmatprep.subr.mxu0 0.0
      %673 = vmatpush1.msra.mxu0 0.0
      %674 = vmatprep.mubr.f32.mxu0 0.0
      %675 = vmatmul.mubr.f32.gmra.mrb[0].mxu0 %v605
      %v676 = vpop.f32.mrb[0].mxu0
      %v677 = vadd.f32 0.0, %v676
      %v678 = vpop.f32.mrb[0].mxu0
      %679 = vmatprep.mubr.f32.mxu0 0.0
      %680 = vmatmul.mubr.f32.gmra.mrb[0].mxu0 %v608
      %v681 = vpop.f32.mrb[0].mxu0
      %v682 = vadd.f32 0.0, %v681
      %v683 = vpop.f32.mrb[0].mxu0
      %684 = vdwg.mxu0
      %v685 = vadd.f32 %v602, %v677
      %v686 = vadd.f32 %v603, %v682
      %687 = vst [vmem:[%s601] sm:$0xff] %v685
      %688 = vst [vmem:[%s601 + $0x8] sm:$0xff] %v686
    $region61: #{tpu_custom_call.1} parent=1 // pred_fallthru
      _
    // Predicated region
    $region62: #{tpu_custom_call.1} parent=1 // pred_check
      %p689 = pneg %p102
    $region63: #{tpu_custom_call.1} parent=1 // pred_check_branch
      %691 = sbr.rel (%p689) target = $region65
    $region64: #{tpu_custom_call.1} parent=1 // pred_region
      %v692 = vld [vmem:[#allocation11] sm:$0xff]
      %v693 = vld [vmem:[#allocation11 + $0x8] sm:$0xff]
      %v694 = vld [vmem:[#allocation11 + $0x10] sm:$0xff]
      %v695 = vld [vmem:[#allocation11 + $0x18] sm:$0xff]
      %v696 = vld [vmem:[#allocation2] sm:$0xff]
      %v697 = vld [vmem:[#allocation2 + $0x8] sm:$0xff]
      %v698 = vld [vmem:[#allocation2 + $0x10] sm:$0xff]
      %v699 = vld [vmem:[#allocation2 + $0x18] sm:$0xff]
      %701 = vset.pattern.permute.xlu0 0
      %702 = vperm.xlu0 %701, %v692
      %v703 = vpop.permute.xlu0 %702
      %706 = vset.pattern.permute.xlu0 0
      %707 = vperm.xlu0 %706, %v693
      %v708 = vpop.permute.xlu0 %707
      %711 = vset.pattern.permute.xlu0 0
      %712 = vperm.xlu0 %711, %v694
      %v713 = vpop.permute.xlu0 %712
      %716 = vset.pattern.permute.xlu0 0
      %717 = vperm.xlu0 %716, %v695
      %v718 = vpop.permute.xlu0 %717
      %v720 = vmul.f32 %v703, %v696
      %v721 = vmul.f32 %v708, %v697
      %v722 = vmul.f32 %v713, %v698
      %v723 = vmul.f32 %v718, %v699
      %v724 = vld [vmem:[#allocation12] sm:$0x1]
      %v726 = vlaneseq
      %v727 = vshrl.u32 %v726, 7
      %v728 = vsub.s32 0, %v727
      %v729 = vrot.slane %v724, %v728
      %v731 = vadd.f32 %v720, %v729
      %v732 = vadd.f32 %v721, %v729
      %v733 = vadd.f32 %v722, %v729
      %v734 = vadd.f32 %v723, %v729
      %735 = vst [vmem:[#allocation14] sm:$0xff] %v731
      %736 = vst [vmem:[#allocation14 + $0x8] sm:$0xff] %v732
      %737 = vst [vmem:[#allocation14 + $0x10] sm:$0xff] %v733
      %738 = vst [vmem:[#allocation14 + $0x18] sm:$0xff] %v734
    $region65: #{tpu_custom_call.1} parent=1 // pred_fallthru
      _
    // Predicated region
    $region66: #{tpu_custom_call.1} parent=1 // pred_check
      _
    $region67: #{tpu_custom_call.1} parent=1 // pred_check_branch
      %740 = sbr.rel (0) target = $region69
    $region68: #{tpu_custom_call.1} parent=1 // pred_region
      %s742 = ssub.s32 512, 512
      %743 = vsyncadd [#allocation5], %s742
      %s744 = sshll.u32 [#allocation14], 4
      %s745 = int_to_ptr.vmem [resolvable:$true] %s744
      %750 = dma.vmem_to_hbm [thread:$0]  %s745, 512, %s6, [#allocation5], 128, 128, 8
    $region69: #{tpu_custom_call.1} parent=1 // pred_fallthru
      _
    // Predicated region
    $region70: #{tpu_custom_call.1} parent=1 // pred_check
      _
    $region71: #{tpu_custom_call.1} parent=1 // pred_check_branch
      %752 = sbr.rel (0) target = $region73
    $region72: #{tpu_custom_call.1} parent=1 // pred_region
      %753 = dma.done [#allocation5], 512
    $region73: #{tpu_custom_call.1} parent=1 // pred_fallthru
      _
    %754 = vsyncpa [#allocation4], 1
    %755 = vsyncpa [#allocation7], 1
    %756 = vsyncpa [#allocation10], 1
    %757 = vsyncpa [#allocation13], 1
    %758 = vsyncpa [#allocation5], 1

</llo_original>
